<compile_context>
chip_gen: v7x
topology: tpu7x:2x2x1
jax: 0.10.0
libtpu: 0.0.40
codegen_flags: <defaults>
</compile_context>

<pallas_src>
import functools

import jax
import jax.numpy as jnp
from jax.experimental import pallas as pl
from jax.experimental.pallas import tpu as pltpu

_HIDDEN_PAD = 128   # hidden=100 zero-padded to a full lane width
_LANES = 128


def _mlp_kernel(x_ref, w1_ref, b1_ref, w2_ref, b2_ref, w3_ref, b3_ref, o_ref,
                *, matmul_dtype):
    x = x_ref[...].astype(jnp.float32)                          # (TM, cp_ext)

    h1 = jnp.dot(x.astype(matmul_dtype), w1_ref[...].astype(matmul_dtype),
                 preferred_element_type=jnp.float32)            # (TM, 128)
    h1 = h1 + b1_ref[...]
    h1 = jnp.where(h1 > 0, h1, 0.2 * h1)                        # LeakyReLU(0.2)

    h2 = jnp.dot(h1.astype(matmul_dtype), w2_ref[...].astype(matmul_dtype),
                 preferred_element_type=jnp.float32)            # (TM, 128)
    h2 = h2 + b2_ref[...]
    h2 = jnp.where(h2 > 0, h2, 0.2 * h2)

    # Final Linear(hidden, 1) as a lane reduction, emitted lane-dense:
    # output element (r, c) is the prediction for tile-row r*128 + c.
    tm, hid = h2.shape
    h2_blk = h2.reshape(tm // _LANES, _LANES, hid)   # layout-preserving split of rows
    w3 = w3_ref[0, :]                                # (128,)
    out = jnp.sum(h2_blk * w3, axis=-1) + b3_ref[...]   # b3 lane-broadcast row
    o_ref[...] = out.astype(o_ref.dtype)


def _round_up(a, m):
    return ((a + m - 1) // m) * m


def attribute_classifier_forward(c_p, params, cp_dim, cp_ext, *,
                                 tile_rows=1024, matmul_dtype=jnp.float32):
    """Equivalent of AttributeClassifier.forward. Returns a (-1, cp_dim) f32 array."""
    w1, b1, w2, b2, w3, b3 = params          # hidden-padded params (see prepare_params)
    hidden = w1.shape[1]

    x = c_p.reshape(-1, cp_ext)              # dtype cast done inside the kernel
    n = x.shape[0]

    assert tile_rows % _LANES == 0
    tm = min(tile_rows, _round_up(n, _LANES))     # shrink tile for tiny inputs
    n_pad = _round_up(n, tm)
    if n_pad != n:
        x = jnp.pad(x, ((0, n_pad - n), (0, 0)))
    num_tiles = n_pad // tm
    rows_out = tm // _LANES

    kernel = functools.partial(_mlp_kernel, matmul_dtype=matmul_dtype)

    out = pl.pallas_call(
        kernel,
        out_shape=jax.ShapeDtypeStruct((n_pad // _LANES, _LANES), jnp.float32),
        grid=(num_tiles,),
        in_specs=[
            pl.BlockSpec((tm, cp_ext), lambda i: (i, 0)),        # streamed row tiles
            pl.BlockSpec((cp_ext, hidden), lambda i: (0, 0)),    # VMEM-resident weights
            pl.BlockSpec((1, hidden), lambda i: (0, 0)),
            pl.BlockSpec((hidden, hidden), lambda i: (0, 0)),
            pl.BlockSpec((1, hidden), lambda i: (0, 0)),
            pl.BlockSpec((1, hidden), lambda i: (0, 0)),
            pl.BlockSpec((1, _LANES), lambda i: (0, 0)),
        ],
        out_specs=pl.BlockSpec((rows_out, _LANES), lambda i: (i, 0)),
        compiler_params=pltpu.CompilerParams(
            dimension_semantics=("parallel",)),
    )(x, w1, b1, w2, b2, w3, b3)

    pred = out.reshape(-1)[:n]
    return pred.reshape(-1, cp_dim)


def init_torch_params(key, cp_ext, hidden=100):
    """Deterministic synthetic parameters with PyTorch nn.Linear shapes/init."""
    ks = jax.random.split(key, 6)

    def uniform(k, shape, fan_in):
        bound = fan_in ** -0.5
        return jax.random.uniform(k, shape, jnp.float32, -bound, bound)

    w1 = uniform(ks[0], (hidden, cp_ext), cp_ext)    # Linear(cp_ext, 100)
    b1 = uniform(ks[1], (hidden,), cp_ext)
    w2 = uniform(ks[2], (hidden, hidden), hidden)    # Linear(100, 100)
    b2 = uniform(ks[3], (hidden,), hidden)
    w3 = uniform(ks[4], (1, hidden), hidden)         # Linear(100, 1)
    b3 = uniform(ks[5], (1,), hidden)
    return (w1, b1, w2, b2, w3, b3)


def prepare_params(torch_params, hidden_pad=_HIDDEN_PAD):
    """Transpose to (in, out) and zero-pad hidden 100 -> 128 (numerics exact)."""
    w1, b1, w2, b2, w3, b3 = [p.astype(jnp.float32) for p in torch_params]
    hidden = w1.shape[0]
    pad = hidden_pad - hidden
    w1p = jnp.pad(w1.T, ((0, 0), (0, pad)))                 # (cp_ext, 128)
    b1p = jnp.pad(b1[None, :], ((0, 0), (0, pad)))          # (1, 128)
    w2p = jnp.pad(w2.T, ((0, pad), (0, pad)))               # (128, 128)
    b2p = jnp.pad(b2[None, :], ((0, 0), (0, pad)))          # (1, 128)
    w3p = jnp.pad(w3, ((0, 0), (0, pad)))                   # (1, 128)
    b3p = jnp.full((1, _LANES), b3[0], jnp.float32)         # scalar bias, lane-broadcast
    return (w1p, b1p, w2p, b2p, w3p, b3p)


def _reference(c_p, torch_params, cp_dim, cp_ext):
    w1, b1, w2, b2, w3, b3 = torch_params
    x = c_p.reshape(-1, cp_ext).astype(jnp.float32)
    lrelu = lambda t: jnp.where(t > 0, t, 0.2 * t)
    h = lrelu(x @ w1.T + b1)
    h = lrelu(h @ w2.T + b2)
    return (h @ w3.T + b3).reshape(-1, cp_dim)


if __name__ == "__main__":
    cp_dim, cp_ext = 4, 32
    key = jax.random.PRNGKey(0)
    k1, k2, k_p = jax.random.split(key, 3)

    torch_params = init_torch_params(k_p, cp_ext)
    params = prepare_params(torch_params)

    # Small case: (batch=2, cp_dim=4, cp_ext=32) -> N=8 rows, single tile.
    c_p_small = jax.random.normal(k1, (2, cp_dim, cp_ext), dtype=jnp.float32)
    out_small = jax.block_until_ready(
        attribute_classifier_forward(c_p_small, params, cp_dim, cp_ext))
    ref_small = _reference(c_p_small, torch_params, cp_dim, cp_ext)
    assert out_small.shape == ref_small.shape, (out_small.shape, ref_small.shape)
    assert jnp.allclose(out_small, ref_small, atol=1e-4, rtol=1e-4), \
        float(jnp.max(jnp.abs(out_small - ref_small)))

    # Multi-tile case: N = 16*96 = 1536 rows -> padded to 2048, grid=(2,).
    c_p_big = jax.random.normal(k2, (16, 96, cp_ext), dtype=jnp.float32)
    out_big = jax.block_until_ready(
        attribute_classifier_forward(c_p_big, params, 96, cp_ext))
    ref_big = _reference(c_p_big, torch_params, 96, cp_ext)
    assert out_big.shape == ref_big.shape, (out_big.shape, ref_big.shape)
    assert jnp.allclose(out_big, ref_big, atol=1e-4, rtol=1e-4), \
        float(jnp.max(jnp.abs(out_big - ref_big)))

    print("KERNEL_OK")
</pallas_src>

<mosaic_0001>
module attributes {stable_mosaic.version = 11 : i64} {
  func.func @_mlp_kernel(%arg0: i32, %arg1: memref<128x32xf32, #tpu.memory_space<vmem>>, %arg2: memref<32x128xf32, #tpu.memory_space<vmem>>, %arg3: memref<1x128xf32, #tpu.memory_space<vmem>>, %arg4: memref<128x128xf32, #tpu.memory_space<vmem>>, %arg5: memref<1x128xf32, #tpu.memory_space<vmem>>, %arg6: memref<1x128xf32, #tpu.memory_space<vmem>>, %arg7: memref<1x128xf32, #tpu.memory_space<vmem>>, %arg8: memref<1x128xf32, #tpu.memory_space<vmem>>) attributes {dimension_semantics = [#tpu.dimension_semantics<parallel>], iteration_bounds = array<i64: 1>, scalar_prefetch = 0 : i64, scratch_operands = 0 : i64, tpu.core_type = #tpu.core_type<tc>, window_params = [{transform_indices = @transform_0, window_bounds = array<i64: 128, 32>}, {pipeline_mode = #tpu.pipeline_mode<synchronous>, transform_indices = @transform_1, window_bounds = array<i64: 32, 128>}, {pipeline_mode = #tpu.pipeline_mode<synchronous>, transform_indices = @transform_2, window_bounds = array<i64: 1, 128>}, {pipeline_mode = #tpu.pipeline_mode<synchronous>, transform_indices = @transform_3, window_bounds = array<i64: 128, 128>}, {pipeline_mode = #tpu.pipeline_mode<synchronous>, transform_indices = @transform_4, window_bounds = array<i64: 1, 128>}, {pipeline_mode = #tpu.pipeline_mode<synchronous>, transform_indices = @transform_5, window_bounds = array<i64: 1, 128>}, {pipeline_mode = #tpu.pipeline_mode<synchronous>, transform_indices = @transform_6, window_bounds = array<i64: 1, 128>}, {transform_indices = @transform_7, window_bounds = array<i64: 1, 128>}]} {
    %c0 = arith.constant 0 : index
    %c0_0 = arith.constant 0 : index
    %0 = vector.load %arg1[%c0, %c0_0] : memref<128x32xf32, #tpu.memory_space<vmem>>, vector<128x32xf32>
    %c0_1 = arith.constant 0 : index
    %c0_2 = arith.constant 0 : index
    %1 = vector.load %arg2[%c0_1, %c0_2] : memref<32x128xf32, #tpu.memory_space<vmem>>, vector<32x128xf32>
    %cst = arith.constant dense<0.000000e+00> : vector<128x128xf32>
    %2 = tpu.matmul %0, %1, %cst {dimension_numbers = #tpu.dot_dimension_numbers<[1], [0], [0], [1], [0, 0, 1, 1], [], []>} : vector<128x32xf32>, vector<32x128xf32>, vector<128x128xf32> -> vector<128x128xf32>
    %c0_3 = arith.constant 0 : index
    %c0_4 = arith.constant 0 : index
    %3 = vector.load %arg3[%c0_3, %c0_4] : memref<1x128xf32, #tpu.memory_space<vmem>>, vector<1x128xf32>
    %4 = vector.broadcast %3 : vector<1x128xf32> to vector<128x128xf32>
    %5 = arith.addf %2, %4 : vector<128x128xf32>
    %cst_5 = arith.constant 0.000000e+00 : f32
    %6 = vector.broadcast %cst_5 : f32 to vector<128x128xf32>
    %7 = arith.cmpf ogt, %5, %6 : vector<128x128xf32>
    %cst_6 = arith.constant 2.000000e-01 : f32
    %8 = vector.broadcast %cst_6 : f32 to vector<128x128xf32>
    %9 = arith.mulf %8, %5 : vector<128x128xf32>
    %10 = arith.select %7, %5, %9 : vector<128x128xi1>, vector<128x128xf32>
    %c0_7 = arith.constant 0 : index
    %c0_8 = arith.constant 0 : index
    %11 = vector.load %arg4[%c0_7, %c0_8] : memref<128x128xf32, #tpu.memory_space<vmem>>, vector<128x128xf32>
    %cst_9 = arith.constant dense<0.000000e+00> : vector<128x128xf32>
    %12 = tpu.matmul %10, %11, %cst_9 {dimension_numbers = #tpu.dot_dimension_numbers<[1], [0], [0], [1], [0, 0, 1, 1], [], []>} : vector<128x128xf32>, vector<128x128xf32>, vector<128x128xf32> -> vector<128x128xf32>
    %c0_10 = arith.constant 0 : index
    %c0_11 = arith.constant 0 : index
    %13 = vector.load %arg5[%c0_10, %c0_11] : memref<1x128xf32, #tpu.memory_space<vmem>>, vector<1x128xf32>
    %14 = vector.broadcast %13 : vector<1x128xf32> to vector<128x128xf32>
    %15 = arith.addf %12, %14 : vector<128x128xf32>
    %cst_12 = arith.constant 0.000000e+00 : f32
    %16 = vector.broadcast %cst_12 : f32 to vector<128x128xf32>
    %17 = arith.cmpf ogt, %15, %16 : vector<128x128xf32>
    %cst_13 = arith.constant 2.000000e-01 : f32
    %18 = vector.broadcast %cst_13 : f32 to vector<128x128xf32>
    %19 = arith.mulf %18, %15 : vector<128x128xf32>
    %20 = arith.select %17, %15, %19 : vector<128x128xi1>, vector<128x128xf32>
    %21 = vector.shape_cast %20 : vector<128x128xf32> to vector<1x128x128xf32>
    %c0_14 = arith.constant 0 : index
    %c0_15 = arith.constant 0 : index
    %22 = vector.load %arg6[%c0_14, %c0_15] : memref<1x128xf32, #tpu.memory_space<vmem>>, vector<1x128xf32>
    %23 = vector.shape_cast %22 : vector<1x128xf32> to vector<128xf32>
    %24 = vector.shape_cast %23 : vector<128xf32> to vector<1x1x128xf32>
    %25 = vector.broadcast %24 : vector<1x1x128xf32> to vector<1x128x128xf32>
    %26 = arith.mulf %21, %25 : vector<1x128x128xf32>
    %cst_16 = arith.constant dense<0.000000e+00> : vector<1x128xf32>
    %27 = vector.multi_reduction <add>, %26, %cst_16 [2] : vector<1x128x128xf32> to vector<1x128xf32>
    %c0_17 = arith.constant 0 : index
    %c0_18 = arith.constant 0 : index
    %28 = vector.load %arg7[%c0_17, %c0_18] : memref<1x128xf32, #tpu.memory_space<vmem>>, vector<1x128xf32>
    %29 = arith.addf %27, %28 : vector<1x128xf32>
    %c0_19 = arith.constant 0 : index
    %c0_20 = arith.constant 0 : index
    %30 = vector.load %arg8[%c0_19, %c0_20] : memref<1x128xf32, #tpu.memory_space<vmem>>, vector<1x128xf32>
    tpu.vector_store %arg8[%c0_19, %c0_20], %29 {strides = array<i32>} : memref<1x128xf32, #tpu.memory_space<vmem>>, vector<1x128xf32>,
    return
  }
  func.func @transform_0(%arg0: i32) -> (i32, i32) {
    %c0_i32 = arith.constant 0 : i32
    %c0_i32_0 = arith.constant 0 : i32
    return %arg0, %c0_i32 : i32, i32
  }
  func.func @transform_1(%arg0: i32) -> (i32, i32) {
    %c0_i32 = arith.constant 0 : i32
    %c0_i32_0 = arith.constant 0 : i32
    %c0_i32_1 = arith.constant 0 : i32
    return %c0_i32, %c0_i32_0 : i32, i32
  }
  func.func @transform_2(%arg0: i32) -> (i32, i32) {
    %c0_i32 = arith.constant 0 : i32
    %c0_i32_0 = arith.constant 0 : i32
    %c0_i32_1 = arith.constant 0 : i32
    return %c0_i32, %c0_i32_0 : i32, i32
  }
  func.func @transform_3(%arg0: i32) -> (i32, i32) {
    %c0_i32 = arith.constant 0 : i32
    %c0_i32_0 = arith.constant 0 : i32
    %c0_i32_1 = arith.constant 0 : i32
    return %c0_i32, %c0_i32_0 : i32, i32
  }
  func.func @transform_4(%arg0: i32) -> (i32, i32) {
    %c0_i32 = arith.constant 0 : i32
    %c0_i32_0 = arith.constant 0 : i32
    %c0_i32_1 = arith.constant 0 : i32
    return %c0_i32, %c0_i32_0 : i32, i32
  }
  func.func @transform_5(%arg0: i32) -> (i32, i32) {
    %c0_i32 = arith.constant 0 : i32
    %c0_i32_0 = arith.constant 0 : i32
    %c0_i32_1 = arith.constant 0 : i32
    return %c0_i32, %c0_i32_0 : i32, i32
  }
  func.func @transform_6(%arg0: i32) -> (i32, i32) {
    %c0_i32 = arith.constant 0 : i32
    %c0_i32_0 = arith.constant 0 : i32
    %c0_i32_1 = arith.constant 0 : i32
    return %c0_i32, %c0_i32_0 : i32, i32
  }
  func.func @transform_7(%arg0: i32) -> (i32, i32) {
    %c0_i32 = arith.constant 0 : i32
    %c0_i32_0 = arith.constant 0 : i32
    return %arg0, %c0_i32 : i32, i32
  }
}

</mosaic_0001>

<llo_original>
// kernel: tpu_custom_call.1
$region0: #{tpu_custom_call.1}
  #allocation0 [shape = 'u32[]', space=smem, size = 0x4, offset = 0x4, fixed_abs, tag = 'smem constant byte address 0x4 - core index']
  #allocation1 [shape = 'u32[144,128]{1,0:T(1,128)}', space=vmem, size = 0x12000, scoped, tag = 'internal scratch']
  %s0 = inlined_call_operand.vmem [shape: f32[128,32], index: 0, kind: input, shape index: {}]
  %s1 = inlined_call_operand.vmem [shape: f32[32,128], index: 1, kind: input, shape index: {}]
  %s2 = inlined_call_operand.vmem [shape: f32[1,128], index: 2, kind: input, shape index: {}]
  %s3 = inlined_call_operand.vmem [shape: f32[128,128], index: 3, kind: input, shape index: {}]
  %s4 = inlined_call_operand.vmem [shape: f32[1,128], index: 4, kind: input, shape index: {}]
  %s5 = inlined_call_operand.vmem [shape: f32[1,128], index: 5, kind: input, shape index: {}]
  %s6 = inlined_call_operand.vmem [shape: f32[1,128], index: 6, kind: input, shape index: {}]
  %s7 = inlined_call_operand.hbm [shape: f32[1,128], index: 7, kind: output, shape index: {}]
  %s8 = sld [smem:[#allocation0]]
  $region38: #{tpu_custom_call.1} parent=0
    _
  %s10 = ssub.s32 1, %s8
  %s11 = scalar_select 0, %s10, %s8
  $region1: #{tpu_custom_call.1} parent=0
    #allocation2 [shape = 'u8[512]{0}', space=vmem, size = 0x400, scoped, tag = 'output window, operand 0, single buffered']
    #allocation3 [shape = 's32[1]{0}', space=sflag, size = 0x4, scoped, tag = 'scoped memory for tpu_custom_call.1']
    %12 = vsyncpa [#allocation3], 0
    // Predicated region
    $region2: #{tpu_custom_call.1} parent=1 // pred_check
      _
    $region3: #{tpu_custom_call.1} parent=1 // pred_check_branch
      %14 = sbr.rel (0) target = $region5
    $region4: #{tpu_custom_call.1} parent=1 // pred_region
      _
    $region5: #{tpu_custom_call.1} parent=1 // pred_fallthru
      _
    // Predicated region
    $region6: #{tpu_custom_call.1} parent=1 // pred_check
      _
    $region7: #{tpu_custom_call.1} parent=1 // pred_check_branch
      %16 = sbr.rel (0) target = $region9
    $region8: #{tpu_custom_call.1} parent=1 // pred_region
      _
    $region9: #{tpu_custom_call.1} parent=1 // pred_fallthru
      _
    // Predicated region
    $region10: #{tpu_custom_call.1} parent=1 // pred_check
      _
    $region11: #{tpu_custom_call.1} parent=1 // pred_check_branch
      %18 = sbr.rel (0) target = $region13
    $region12: #{tpu_custom_call.1} parent=1 // pred_region
      _
    $region13: #{tpu_custom_call.1} parent=1 // pred_fallthru
      _
    // Predicated region
    $region14: #{tpu_custom_call.1} parent=1 // pred_check
      _
    $region15: #{tpu_custom_call.1} parent=1 // pred_check_branch
      %20 = sbr.rel (0) target = $region17
    $region16: #{tpu_custom_call.1} parent=1 // pred_region
      _
    $region17: #{tpu_custom_call.1} parent=1 // pred_fallthru
      _
    // Predicated region
    $region18: #{tpu_custom_call.1} parent=1 // pred_check
      _
    $region19: #{tpu_custom_call.1} parent=1 // pred_check_branch
      %22 = sbr.rel (0) target = $region21
    $region20: #{tpu_custom_call.1} parent=1 // pred_region
      _
    $region21: #{tpu_custom_call.1} parent=1 // pred_fallthru
      _
    // Predicated region
    $region22: #{tpu_custom_call.1} parent=1 // pred_check
      _
    $region23: #{tpu_custom_call.1} parent=1 // pred_check_branch
      %24 = sbr.rel (0) target = $region25
    $region24: #{tpu_custom_call.1} parent=1 // pred_region
      _
    $region25: #{tpu_custom_call.1} parent=1 // pred_fallthru
      _
    // Predicated region
    $region26: #{tpu_custom_call.1} parent=1 // pred_check
      _
    $region27: #{tpu_custom_call.1} parent=1 // pred_check_branch
      %26 = sbr.rel (0) target = $region29
    $region28: #{tpu_custom_call.1} parent=1 // pred_region
      _
    $region29: #{tpu_custom_call.1} parent=1 // pred_fallthru
      _
    %v27 = vld [vmem:[%s0] sm:$0xff]
    %v28 = vld [vmem:[%s0 + $0x8] sm:$0xff]
    %v29 = vld [vmem:[%s0 + $0x10] sm:$0xff]
    %v30 = vld [vmem:[%s0 + $0x18] sm:$0xff]
    %v31 = vld [vmem:[%s0 + $0x20] sm:$0xff]
    %v32 = vld [vmem:[%s0 + $0x28] sm:$0xff]
    %v33 = vld [vmem:[%s0 + $0x30] sm:$0xff]
    %v34 = vld [vmem:[%s0 + $0x38] sm:$0xff]
    %v35 = vld [vmem:[%s0 + $0x40] sm:$0xff]
    %v36 = vld [vmem:[%s0 + $0x48] sm:$0xff]
    %v37 = vld [vmem:[%s0 + $0x50] sm:$0xff]
    %v38 = vld [vmem:[%s0 + $0x58] sm:$0xff]
    %v39 = vld [vmem:[%s0 + $0x60] sm:$0xff]
    %v40 = vld [vmem:[%s0 + $0x68] sm:$0xff]
    %v41 = vld [vmem:[%s0 + $0x70] sm:$0xff]
    %v42 = vld [vmem:[%s0 + $0x78] sm:$0xff]
    %v43 = vld [vmem:[%s1] sm:$0xff]
    %v44 = vld [vmem:[%s1 + $0x8] sm:$0xff]
    %v45 = vld [vmem:[%s1 + $0x10] sm:$0xff]
    %v46 = vld [vmem:[%s1 + $0x18] sm:$0xff]
    %v47 = vld [vmem:[%s2] sm:$0x1]
    %v49 = vlaneseq
    %v50 = vshrl.u32 %v49, 7
    %v51 = vsub.s32 0, %v50
    %v52 = vrot.slane %v47, %v51
    %vm54 = vcmask 261120
    %v56 = vsel %vm54, %v27, 0
    %v59 = vsel %vm54, %v28, 0
    %v62 = vsel %vm54, %v29, 0
    %v65 = vsel %vm54, %v30, 0
    %v68 = vsel %vm54, %v31, 0
    %v71 = vsel %vm54, %v32, 0
    %v74 = vsel %vm54, %v33, 0
    %v77 = vsel %vm54, %v34, 0
    %v80 = vsel %vm54, %v35, 0
    %v83 = vsel %vm54, %v36, 0
    %v86 = vsel %vm54, %v37, 0
    %v89 = vsel %vm54, %v38, 0
    %v92 = vsel %vm54, %v39, 0
    %v95 = vsel %vm54, %v40, 0
    %v98 = vsel %vm54, %v41, 0
    %v101 = vsel %vm54, %v42, 0
    %103 = vmatprep.subr.mxu0 0.0
    %104 = vmatpush1.msra.mxu0 %v43
    %105 = vmatprep.subr.mxu0 0.0
    %106 = vmatpush1.msra.mxu0 %v44
    %107 = vmatprep.subr.mxu0 0.0
    %108 = vmatpush1.msra.mxu0 %v45
    %109 = vmatprep.subr.mxu0 0.0
    %110 = vmatpush1.msra.mxu0 %v46
    %111 = vmatprep.subr.mxu0 0.0
    %112 = vmatpush1.msra.mxu0 0.0
    %113 = vmatprep.subr.mxu0 0.0
    %114 = vmatpush1.msra.mxu0 0.0
    %115 = vmatprep.subr.mxu0 0.0
    %116 = vmatpush1.msra.mxu0 0.0
    %117 = vmatprep.subr.mxu0 0.0
    %118 = vmatpush1.msra.mxu0 0.0
    %119 = vmatprep.subr.mxu0 0.0
    %120 = vmatpush1.msra.mxu0 0.0
    %121 = vmatprep.subr.mxu0 0.0
    %122 = vmatpush1.msra.mxu0 0.0
    %123 = vmatprep.subr.mxu0 0.0
    %124 = vmatpush1.msra.mxu0 0.0
    %125 = vmatprep.subr.mxu0 0.0
    %126 = vmatpush1.msra.mxu0 0.0
    %127 = vmatprep.subr.mxu0 0.0
    %128 = vmatpush1.msra.mxu0 0.0
    %129 = vmatprep.subr.mxu0 0.0
    %130 = vmatpush1.msra.mxu0 0.0
    %131 = vmatprep.subr.mxu0 0.0
    %132 = vmatpush1.msra.mxu0 0.0
    %133 = vmatprep.subr.mxu0 0.0
    %134 = vmatpush1.msra.mxu0 0.0
    %135 = vmatprep.subr.mxu0 0.0
    %136 = vmatpush1.msra.mxu0 0.0
    %137 = vmatprep.subr.mxu0 0.0
    %138 = vmatpush1.msra.mxu0 0.0
    %139 = vmatprep.subr.mxu0 0.0
    %140 = vmatpush1.msra.mxu0 0.0
    %141 = vmatprep.subr.mxu0 0.0
    %142 = vmatpush1.msra.mxu0 0.0
    %143 = vmatprep.subr.mxu0 0.0
    %144 = vmatpush1.msra.mxu0 0.0
    %145 = vmatprep.subr.mxu0 0.0
    %146 = vmatpush1.msra.mxu0 0.0
    %147 = vmatprep.subr.mxu0 0.0
    %148 = vmatpush1.msra.mxu0 0.0
    %149 = vmatprep.subr.mxu0 0.0
    %150 = vmatpush1.msra.mxu0 0.0
    %151 = vmatprep.subr.mxu0 0.0
    %152 = vmatpush1.msra.mxu0 0.0
    %153 = vmatprep.subr.mxu0 0.0
    %154 = vmatpush1.msra.mxu0 0.0
    %155 = vmatprep.subr.mxu0 0.0
    %156 = vmatpush1.msra.mxu0 0.0
    %157 = vmatprep.subr.mxu0 0.0
    %158 = vmatpush1.msra.mxu0 0.0
    %159 = vmatprep.subr.mxu0 0.0
    %160 = vmatpush1.msra.mxu0 0.0
    %161 = vmatprep.subr.mxu0 0.0
    %162 = vmatpush1.msra.mxu0 0.0
    %163 = vmatprep.subr.mxu0 0.0
    %164 = vmatpush1.msra.mxu0 0.0
    %165 = vmatprep.subr.mxu0 0.0
    %166 = vmatpush1.msra.mxu0 0.0
    %167 = vmatprep.mubr.f32.mxu0 0.0
    %168 = vmatmul.mubr.f32.gmra.mrb[0].mxu0 %v56
    %v169 = vpop.f32.mrb[0].mxu0
    %v170 = vadd.f32 %v52, %v169
    %v171 = vpop.f32.mrb[0].mxu0
    %172 = vmatprep.mubr.f32.mxu0 0.0
    %173 = vmatmul.mubr.f32.gmra.mrb[0].mxu0 %v59
    %v174 = vpop.f32.mrb[0].mxu0
    %v175 = vadd.f32 %v52, %v174
    %v176 = vpop.f32.mrb[0].mxu0
    %177 = vmatprep.mubr.f32.mxu0 0.0
    %178 = vmatmul.mubr.f32.gmra.mrb[0].mxu0 %v62
    %v179 = vpop.f32.mrb[0].mxu0
    %v180 = vadd.f32 %v52, %v179
    %v181 = vpop.f32.mrb[0].mxu0
    %182 = vmatprep.mubr.f32.mxu0 0.0
    %183 = vmatmul.mubr.f32.gmra.mrb[0].mxu0 %v65
    %v184 = vpop.f32.mrb[0].mxu0
    %v185 = vadd.f32 %v52, %v184
    %v186 = vpop.f32.mrb[0].mxu0
    %187 = vmatprep.mubr.f32.mxu0 0.0
    %188 = vmatmul.mubr.f32.gmra.mrb[0].mxu0 %v68
    %v189 = vpop.f32.mrb[0].mxu0
    %v190 = vadd.f32 %v52, %v189
    %v191 = vpop.f32.mrb[0].mxu0
    %192 = vmatprep.mubr.f32.mxu0 0.0
    %193 = vmatmul.mubr.f32.gmra.mrb[0].mxu0 %v71
    %v194 = vpop.f32.mrb[0].mxu0
    %v195 = vadd.f32 %v52, %v194
    %v196 = vpop.f32.mrb[0].mxu0
    %197 = vmatprep.mubr.f32.mxu0 0.0
    %198 = vmatmul.mubr.f32.gmra.mrb[0].mxu0 %v74
    %v199 = vpop.f32.mrb[0].mxu0
    %v200 = vadd.f32 %v52, %v199
    %v201 = vpop.f32.mrb[0].mxu0
    %202 = vmatprep.mubr.f32.mxu0 0.0
    %203 = vmatmul.mubr.f32.gmra.mrb[0].mxu0 %v77
    %v204 = vpop.f32.mrb[0].mxu0
    %v205 = vadd.f32 %v52, %v204
    %v206 = vpop.f32.mrb[0].mxu0
    %207 = vmatprep.mubr.f32.mxu0 0.0
    %208 = vmatmul.mubr.f32.gmra.mrb[0].mxu0 %v80
    %v209 = vpop.f32.mrb[0].mxu0
    %v210 = vadd.f32 %v52, %v209
    %v211 = vpop.f32.mrb[0].mxu0
    %212 = vmatprep.mubr.f32.mxu0 0.0
    %213 = vmatmul.mubr.f32.gmra.mrb[0].mxu0 %v83
    %v214 = vpop.f32.mrb[0].mxu0
    %v215 = vadd.f32 %v52, %v214
    %v216 = vpop.f32.mrb[0].mxu0
    %217 = vmatprep.mubr.f32.mxu0 0.0
    %218 = vmatmul.mubr.f32.gmra.mrb[0].mxu0 %v86
    %v219 = vpop.f32.mrb[0].mxu0
    %v220 = vadd.f32 %v52, %v219
    %v221 = vpop.f32.mrb[0].mxu0
    %222 = vmatprep.mubr.f32.mxu0 0.0
    %223 = vmatmul.mubr.f32.gmra.mrb[0].mxu0 %v89
    %v224 = vpop.f32.mrb[0].mxu0
    %v225 = vadd.f32 %v52, %v224
    %v226 = vpop.f32.mrb[0].mxu0
    %227 = vmatprep.mubr.f32.mxu0 0.0
    %228 = vmatmul.mubr.f32.gmra.mrb[0].mxu0 %v92
    %v229 = vpop.f32.mrb[0].mxu0
    %v230 = vadd.f32 %v52, %v229
    %v231 = vpop.f32.mrb[0].mxu0
    %232 = vmatprep.mubr.f32.mxu0 0.0
    %233 = vmatmul.mubr.f32.gmra.mrb[0].mxu0 %v95
    %v234 = vpop.f32.mrb[0].mxu0
    %v235 = vadd.f32 %v52, %v234
    %v236 = vpop.f32.mrb[0].mxu0
    %237 = vmatprep.mubr.f32.mxu0 0.0
    %238 = vmatmul.mubr.f32.gmra.mrb[0].mxu0 %v98
    %v239 = vpop.f32.mrb[0].mxu0
    %v240 = vadd.f32 %v52, %v239
    %v241 = vpop.f32.mrb[0].mxu0
    %242 = vmatprep.mubr.f32.mxu0 0.0
    %243 = vmatmul.mubr.f32.gmra.mrb[0].mxu0 %v101
    %v244 = vpop.f32.mrb[0].mxu0
    %v245 = vadd.f32 %v52, %v244
    %v246 = vpop.f32.mrb[0].mxu0
    %247 = vdwg.mxu0
    %vm248 = vcmp.gt.f32.partialorder %v170, 0.0
    %vm249 = vcmp.gt.f32.partialorder %v175, 0.0
    %vm250 = vcmp.gt.f32.partialorder %v180, 0.0
    %vm251 = vcmp.gt.f32.partialorder %v185, 0.0
    %vm252 = vcmp.gt.f32.partialorder %v190, 0.0
    %vm253 = vcmp.gt.f32.partialorder %v195, 0.0
    %vm254 = vcmp.gt.f32.partialorder %v200, 0.0
    %vm255 = vcmp.gt.f32.partialorder %v205, 0.0
    %vm256 = vcmp.gt.f32.partialorder %v210, 0.0
    %vm257 = vcmp.gt.f32.partialorder %v215, 0.0
    %vm258 = vcmp.gt.f32.partialorder %v220, 0.0
    %vm259 = vcmp.gt.f32.partialorder %v225, 0.0
    %vm260 = vcmp.gt.f32.partialorder %v230, 0.0
    %vm261 = vcmp.gt.f32.partialorder %v235, 0.0
    %vm262 = vcmp.gt.f32.partialorder %v240, 0.0
    %vm263 = vcmp.gt.f32.partialorder %v245, 0.0
    %v264 = vmul.f32 %v170, 0.2
    %v265 = vmul.f32 %v175, 0.2
    %v266 = vmul.f32 %v180, 0.2
    %v267 = vmul.f32 %v185, 0.2
    %v268 = vmul.f32 %v190, 0.2
    %v269 = vmul.f32 %v195, 0.2
    %v270 = vmul.f32 %v200, 0.2
    %v271 = vmul.f32 %v205, 0.2
    %v272 = vmul.f32 %v210, 0.2
    %v273 = vmul.f32 %v215, 0.2
    %v274 = vmul.f32 %v220, 0.2
    %v275 = vmul.f32 %v225, 0.2
    %v276 = vmul.f32 %v230, 0.2
    %v277 = vmul.f32 %v235, 0.2
    %v278 = vmul.f32 %v240, 0.2
    %v279 = vmul.f32 %v245, 0.2
    %v280 = vsel %vm248, %v170, %v264
    %v281 = vsel %vm249, %v175, %v265
    %v282 = vsel %vm250, %v180, %v266
    %v283 = vsel %vm251, %v185, %v267
    %v284 = vsel %vm252, %v190, %v268
    %v285 = vsel %vm253, %v195, %v269
    %v286 = vsel %vm254, %v200, %v270
    %v287 = vsel %vm255, %v205, %v271
    %v288 = vsel %vm256, %v210, %v272
    %v289 = vsel %vm257, %v215, %v273
    %v290 = vsel %vm258, %v220, %v274
    %v291 = vsel %vm259, %v225, %v275
    %v292 = vsel %vm260, %v230, %v276
    %v293 = vsel %vm261, %v235, %v277
    %v294 = vsel %vm262, %v240, %v278
    %v295 = vsel %vm263, %v245, %v279
    %v296 = vld [vmem:[%s3] sm:$0xff]
    %v297 = vld [vmem:[%s3 + $0x8] sm:$0xff]
    %v298 = vld [vmem:[%s3 + $0x10] sm:$0xff]
    %v299 = vld [vmem:[%s3 + $0x18] sm:$0xff]
    %v300 = vld [vmem:[%s3 + $0x20] sm:$0xff]
    %v301 = vld [vmem:[%s3 + $0x28] sm:$0xff]
    %v302 = vld [vmem:[%s3 + $0x30] sm:$0xff]
    %v303 = vld [vmem:[%s3 + $0x38] sm:$0xff]
    %v304 = vld [vmem:[%s3 + $0x40] sm:$0xff]
    %v305 = vld [vmem:[%s3 + $0x48] sm:$0xff]
    %v306 = vld [vmem:[%s3 + $0x50] sm:$0xff]
    %v307 = vld [vmem:[%s3 + $0x58] sm:$0xff]
    %v308 = vld [vmem:[%s3 + $0x60] sm:$0xff]
    %v309 = vld [vmem:[%s3 + $0x68] sm:$0xff]
    %v310 = vld [vmem:[%s3 + $0x70] sm:$0xff]
    %v311 = vld [vmem:[%s3 + $0x78] sm:$0xff]
    %v312 = vld [vmem:[%s4] sm:$0x1]
    %v314 = vlaneseq
    %v315 = vshrl.u32 %v314, 7
    %v316 = vsub.s32 0, %v315
    %v317 = vrot.slane %v312, %v316
    %319 = vmatprep.subr.mxu0 0.0
    %320 = vmatpush1.msra.mxu0 %v296
    %321 = vmatprep.subr.mxu0 0.0
    %322 = vmatpush1.msra.mxu0 %v297
    %323 = vmatprep.subr.mxu0 0.0
    %324 = vmatpush1.msra.mxu0 %v298
    %325 = vmatprep.subr.mxu0 0.0
    %326 = vmatpush1.msra.mxu0 %v299
    %327 = vmatprep.subr.mxu0 0.0
    %328 = vmatpush1.msra.mxu0 %v300
    %329 = vmatprep.subr.mxu0 0.0
    %330 = vmatpush1.msra.mxu0 %v301
    %331 = vmatprep.subr.mxu0 0.0
    %332 = vmatpush1.msra.mxu0 %v302
    %333 = vmatprep.subr.mxu0 0.0
    %334 = vmatpush1.msra.mxu0 %v303
    %335 = vmatprep.subr.mxu0 0.0
    %336 = vmatpush1.msra.mxu0 %v304
    %337 = vmatprep.subr.mxu0 0.0
    %338 = vmatpush1.msra.mxu0 %v305
    %339 = vmatprep.subr.mxu0 0.0
    %340 = vmatpush1.msra.mxu0 %v306
    %341 = vmatprep.subr.mxu0 0.0
    %342 = vmatpush1.msra.mxu0 %v307
    %343 = vmatprep.subr.mxu0 0.0
    %344 = vmatpush1.msra.mxu0 %v308
    %345 = vmatprep.subr.mxu0 0.0
    %346 = vmatpush1.msra.mxu0 %v309
    %347 = vmatprep.subr.mxu0 0.0
    %348 = vmatpush1.msra.mxu0 %v310
    %349 = vmatprep.subr.mxu0 0.0
    %350 = vmatpush1.msra.mxu0 %v311
    %351 = vmatprep.subr.mxu0 0.0
    %352 = vmatpush1.msra.mxu0 0.0
    %353 = vmatprep.subr.mxu0 0.0
    %354 = vmatpush1.msra.mxu0 0.0
    %355 = vmatprep.subr.mxu0 0.0
    %356 = vmatpush1.msra.mxu0 0.0
    %357 = vmatprep.subr.mxu0 0.0
    %358 = vmatpush1.msra.mxu0 0.0
    %359 = vmatprep.subr.mxu0 0.0
    %360 = vmatpush1.msra.mxu0 0.0
    %361 = vmatprep.subr.mxu0 0.0
    %362 = vmatpush1.msra.mxu0 0.0
    %363 = vmatprep.subr.mxu0 0.0
    %364 = vmatpush1.msra.mxu0 0.0
    %365 = vmatprep.subr.mxu0 0.0
    %366 = vmatpush1.msra.mxu0 0.0
    %367 = vmatprep.subr.mxu0 0.0
    %368 = vmatpush1.msra.mxu0 0.0
    %369 = vmatprep.subr.mxu0 0.0
    %370 = vmatpush1.msra.mxu0 0.0
    %371 = vmatprep.subr.mxu0 0.0
    %372 = vmatpush1.msra.mxu0 0.0
    %373 = vmatprep.subr.mxu0 0.0
    %374 = vmatpush1.msra.mxu0 0.0
    %375 = vmatprep.subr.mxu0 0.0
    %376 = vmatpush1.msra.mxu0 0.0
    %377 = vmatprep.subr.mxu0 0.0
    %378 = vmatpush1.msra.mxu0 0.0
    %379 = vmatprep.subr.mxu0 0.0
    %380 = vmatpush1.msra.mxu0 0.0
    %381 = vmatprep.subr.mxu0 0.0
    %382 = vmatpush1.msra.mxu0 0.0
    %383 = vmatprep.mubr.f32.mxu0 0.0
    %384 = vmatmul.mubr.f32.gmra.mrb[0].mxu0 %v280
    %v385 = vpop.f32.mrb[0].mxu0
    %v386 = vadd.f32 %v317, %v385
    %v387 = vpop.f32.mrb[0].mxu0
    %388 = vmatprep.mubr.f32.mxu0 0.0
    %389 = vmatmul.mubr.f32.gmra.mrb[0].mxu0 %v281
    %v390 = vpop.f32.mrb[0].mxu0
    %v391 = vadd.f32 %v317, %v390
    %v392 = vpop.f32.mrb[0].mxu0
    %393 = vmatprep.mubr.f32.mxu0 0.0
    %394 = vmatmul.mubr.f32.gmra.mrb[0].mxu0 %v282
    %v395 = vpop.f32.mrb[0].mxu0
    %v396 = vadd.f32 %v317, %v395
    %v397 = vpop.f32.mrb[0].mxu0
    %398 = vmatprep.mubr.f32.mxu0 0.0
    %399 = vmatmul.mubr.f32.gmra.mrb[0].mxu0 %v283
    %v400 = vpop.f32.mrb[0].mxu0
    %v401 = vadd.f32 %v317, %v400
    %v402 = vpop.f32.mrb[0].mxu0
    %403 = vmatprep.mubr.f32.mxu0 0.0
    %404 = vmatmul.mubr.f32.gmra.mrb[0].mxu0 %v284
    %v405 = vpop.f32.mrb[0].mxu0
    %v406 = vadd.f32 %v317, %v405
    %v407 = vpop.f32.mrb[0].mxu0
    %408 = vmatprep.mubr.f32.mxu0 0.0
    %409 = vmatmul.mubr.f32.gmra.mrb[0].mxu0 %v285
    %v410 = vpop.f32.mrb[0].mxu0
    %v411 = vadd.f32 %v317, %v410
    %v412 = vpop.f32.mrb[0].mxu0
    %413 = vmatprep.mubr.f32.mxu0 0.0
    %414 = vmatmul.mubr.f32.gmra.mrb[0].mxu0 %v286
    %v415 = vpop.f32.mrb[0].mxu0
    %v416 = vadd.f32 %v317, %v415
    %v417 = vpop.f32.mrb[0].mxu0
    %418 = vmatprep.mubr.f32.mxu0 0.0
    %419 = vmatmul.mubr.f32.gmra.mrb[0].mxu0 %v287
    %v420 = vpop.f32.mrb[0].mxu0
    %v421 = vadd.f32 %v317, %v420
    %v422 = vpop.f32.mrb[0].mxu0
    %423 = vmatprep.mubr.f32.mxu0 0.0
    %424 = vmatmul.mubr.f32.gmra.mrb[0].mxu0 %v288
    %v425 = vpop.f32.mrb[0].mxu0
    %v426 = vadd.f32 %v317, %v425
    %v427 = vpop.f32.mrb[0].mxu0
    %428 = vmatprep.mubr.f32.mxu0 0.0
    %429 = vmatmul.mubr.f32.gmra.mrb[0].mxu0 %v289
    %v430 = vpop.f32.mrb[0].mxu0
    %v431 = vadd.f32 %v317, %v430
    %v432 = vpop.f32.mrb[0].mxu0
    %433 = vmatprep.mubr.f32.mxu0 0.0
    %434 = vmatmul.mubr.f32.gmra.mrb[0].mxu0 %v290
    %v435 = vpop.f32.mrb[0].mxu0
    %v436 = vadd.f32 %v317, %v435
    %v437 = vpop.f32.mrb[0].mxu0
    %438 = vmatprep.mubr.f32.mxu0 0.0
    %439 = vmatmul.mubr.f32.gmra.mrb[0].mxu0 %v291
    %v440 = vpop.f32.mrb[0].mxu0
    %v441 = vadd.f32 %v317, %v440
    %v442 = vpop.f32.mrb[0].mxu0
    %443 = vmatprep.mubr.f32.mxu0 0.0
    %444 = vmatmul.mubr.f32.gmra.mrb[0].mxu0 %v292
    %v445 = vpop.f32.mrb[0].mxu0
    %v446 = vadd.f32 %v317, %v445
    %v447 = vpop.f32.mrb[0].mxu0
    %448 = vmatprep.mubr.f32.mxu0 0.0
    %449 = vmatmul.mubr.f32.gmra.mrb[0].mxu0 %v293
    %v450 = vpop.f32.mrb[0].mxu0
    %v451 = vadd.f32 %v317, %v450
    %v452 = vpop.f32.mrb[0].mxu0
    %453 = vmatprep.mubr.f32.mxu0 0.0
    %454 = vmatmul.mubr.f32.gmra.mrb[0].mxu0 %v294
    %v455 = vpop.f32.mrb[0].mxu0
    %v456 = vadd.f32 %v317, %v455
    %v457 = vpop.f32.mrb[0].mxu0
    %458 = vmatprep.mubr.f32.mxu0 0.0
    %459 = vmatmul.mubr.f32.gmra.mrb[0].mxu0 %v295
    %v460 = vpop.f32.mrb[0].mxu0
    %v461 = vadd.f32 %v317, %v460
    %v462 = vpop.f32.mrb[0].mxu0
    %463 = vdwg.mxu0
    %vm464 = vcmp.gt.f32.partialorder %v386, 0.0
    %vm465 = vcmp.gt.f32.partialorder %v391, 0.0
    %vm466 = vcmp.gt.f32.partialorder %v396, 0.0
    %vm467 = vcmp.gt.f32.partialorder %v401, 0.0
    %vm468 = vcmp.gt.f32.partialorder %v406, 0.0
    %vm469 = vcmp.gt.f32.partialorder %v411, 0.0
    %vm470 = vcmp.gt.f32.partialorder %v416, 0.0
    %vm471 = vcmp.gt.f32.partialorder %v421, 0.0
    %vm472 = vcmp.gt.f32.partialorder %v426, 0.0
    %vm473 = vcmp.gt.f32.partialorder %v431, 0.0
    %vm474 = vcmp.gt.f32.partialorder %v436, 0.0
    %vm475 = vcmp.gt.f32.partialorder %v441, 0.0
    %vm476 = vcmp.gt.f32.partialorder %v446, 0.0
    %vm477 = vcmp.gt.f32.partialorder %v451, 0.0
    %vm478 = vcmp.gt.f32.partialorder %v456, 0.0
    %vm479 = vcmp.gt.f32.partialorder %v461, 0.0
    %v480 = vmul.f32 %v386, 0.2
    %v481 = vmul.f32 %v391, 0.2
    %v482 = vmul.f32 %v396, 0.2
    %v483 = vmul.f32 %v401, 0.2
    %v484 = vmul.f32 %v406, 0.2
    %v485 = vmul.f32 %v411, 0.2
    %v486 = vmul.f32 %v416, 0.2
    %v487 = vmul.f32 %v421, 0.2
    %v488 = vmul.f32 %v426, 0.2
    %v489 = vmul.f32 %v431, 0.2
    %v490 = vmul.f32 %v436, 0.2
    %v491 = vmul.f32 %v441, 0.2
    %v492 = vmul.f32 %v446, 0.2
    %v493 = vmul.f32 %v451, 0.2
    %v494 = vmul.f32 %v456, 0.2
    %v495 = vmul.f32 %v461, 0.2
    %v496 = vsel %vm464, %v386, %v480
    %v497 = vsel %vm465, %v391, %v481
    %v498 = vsel %vm466, %v396, %v482
    %v499 = vsel %vm467, %v401, %v483
    %v500 = vsel %vm468, %v406, %v484
    %v501 = vsel %vm469, %v411, %v485
    %v502 = vsel %vm470, %v416, %v486
    %v503 = vsel %vm471, %v421, %v487
    %v504 = vsel %vm472, %v426, %v488
    %v505 = vsel %vm473, %v431, %v489
    %v506 = vsel %vm474, %v436, %v490
    %v507 = vsel %vm475, %v441, %v491
    %v508 = vsel %vm476, %v446, %v492
    %v509 = vsel %vm477, %v451, %v493
    %v510 = vsel %vm478, %v456, %v494
    %v511 = vsel %vm479, %v461, %v495
    %v512 = vld [vmem:[%s5] sm:$0x1]
    %v514 = vlaneseq
    %v515 = vshrl.u32 %v514, 7
    %v516 = vsub.s32 0, %v515
    %v517 = vrot.slane %v512, %v516
    %v519 = vmul.f32 %v496, %v517
    %v520 = vmul.f32 %v497, %v517
    %v521 = vmul.f32 %v498, %v517
    %v522 = vmul.f32 %v499, %v517
    %v523 = vmul.f32 %v500, %v517
    %v524 = vmul.f32 %v501, %v517
    %v525 = vmul.f32 %v502, %v517
    %v526 = vmul.f32 %v503, %v517
    %v527 = vmul.f32 %v504, %v517
    %v528 = vmul.f32 %v505, %v517
    %v529 = vmul.f32 %v506, %v517
    %v530 = vmul.f32 %v507, %v517
    %v531 = vmul.f32 %v508, %v517
    %v532 = vmul.f32 %v509, %v517
    %v533 = vmul.f32 %v510, %v517
    %v534 = vmul.f32 %v511, %v517
    %535 = vadd.xlane.f32.xlu0 %v519
    %v536 = vpop.xlane.xlu0 %535
    %537 = vadd.xlane.f32.xlu0 %v520
    %v538 = vpop.xlane.xlu0 %537
    %539 = vadd.xlane.f32.xlu0 %v521
    %v540 = vpop.xlane.xlu0 %539
    %541 = vadd.xlane.f32.xlu0 %v522
    %v542 = vpop.xlane.xlu0 %541
    %543 = vadd.xlane.f32.xlu0 %v523
    %v544 = vpop.xlane.xlu0 %543
    %545 = vadd.xlane.f32.xlu0 %v524
    %v546 = vpop.xlane.xlu0 %545
    %547 = vadd.xlane.f32.xlu0 %v525
    %v548 = vpop.xlane.xlu0 %547
    %549 = vadd.xlane.f32.xlu0 %v526
    %v550 = vpop.xlane.xlu0 %549
    %551 = vadd.xlane.f32.xlu0 %v527
    %v552 = vpop.xlane.xlu0 %551
    %553 = vadd.xlane.f32.xlu0 %v528
    %v554 = vpop.xlane.xlu0 %553
    %555 = vadd.xlane.f32.xlu0 %v529
    %v556 = vpop.xlane.xlu0 %555
    %557 = vadd.xlane.f32.xlu0 %v530
    %v558 = vpop.xlane.xlu0 %557
    %559 = vadd.xlane.f32.xlu0 %v531
    %v560 = vpop.xlane.xlu0 %559
    %561 = vadd.xlane.f32.xlu0 %v532
    %v562 = vpop.xlane.xlu0 %561
    %563 = vadd.xlane.f32.xlu0 %v533
    %v564 = vpop.xlane.xlu0 %563
    %565 = vadd.xlane.f32.xlu0 %v534
    %v566 = vpop.xlane.xlu0 %565
    %v567 = vld [vmem:[%s6] sm:$0x1]
    %v569 = vlaneseq
    %v570 = vshrl.u32 %v569, 7
    %v571 = vsub.s32 0, %v570
    %v572 = vrot.slane %v567, %v571
    %574 = vbcast.lane.b32.xlu0 %v572, 256
    %v575 = vpop.permute.xlu0 %574
    %s577 = sor.u32 256, 8
    %578 = vbcast.lane.b32.xlu0 %v572, %s577
    %v579 = vpop.permute.xlu0 %578
    %s581 = sor.u32 256, 16
    %582 = vbcast.lane.b32.xlu0 %v572, %s581
    %v583 = vpop.permute.xlu0 %582
    %s585 = sor.u32 256, 24
    %586 = vbcast.lane.b32.xlu0 %v572, %s585
    %v587 = vpop.permute.xlu0 %586
    %s589 = sor.u32 256, 32
    %590 = vbcast.lane.b32.xlu0 %v572, %s589
    %v591 = vpop.permute.xlu0 %590
    %s593 = sor.u32 256, 40
    %594 = vbcast.lane.b32.xlu0 %v572, %s593
    %v595 = vpop.permute.xlu0 %594
    %s597 = sor.u32 256, 48
    %598 = vbcast.lane.b32.xlu0 %v572, %s597
    %v599 = vpop.permute.xlu0 %598
    %s601 = sor.u32 256, 56
    %602 = vbcast.lane.b32.xlu0 %v572, %s601
    %v603 = vpop.permute.xlu0 %602
    %s605 = sor.u32 256, 64
    %606 = vbcast.lane.b32.xlu0 %v572, %s605
    %v607 = vpop.permute.xlu0 %606
    %s609 = sor.u32 256, 72
    %610 = vbcast.lane.b32.xlu0 %v572, %s609
    %v611 = vpop.permute.xlu0 %610
    %s613 = sor.u32 256, 80
    %614 = vbcast.lane.b32.xlu0 %v572, %s613
    %v615 = vpop.permute.xlu0 %614
    %s617 = sor.u32 256, 88
    %618 = vbcast.lane.b32.xlu0 %v572, %s617
    %v619 = vpop.permute.xlu0 %618
    %s621 = sor.u32 256, 96
    %622 = vbcast.lane.b32.xlu0 %v572, %s621
    %v623 = vpop.permute.xlu0 %622
    %s625 = sor.u32 256, 104
    %626 = vbcast.lane.b32.xlu0 %v572, %s625
    %v627 = vpop.permute.xlu0 %626
    %s629 = sor.u32 256, 112
    %630 = vbcast.lane.b32.xlu0 %v572, %s629
    %v631 = vpop.permute.xlu0 %630
    %s633 = sor.u32 256, 120
    %634 = vbcast.lane.b32.xlu0 %v572, %s633
    %v635 = vpop.permute.xlu0 %634
    %v652 = vadd.f32 %v536, %v575
    %v653 = vadd.f32 %v538, %v579
    %v654 = vadd.f32 %v540, %v583
    %v655 = vadd.f32 %v542, %v587
    %v656 = vadd.f32 %v544, %v591
    %v657 = vadd.f32 %v546, %v595
    %v658 = vadd.f32 %v548, %v599
    %v659 = vadd.f32 %v550, %v603
    %v660 = vadd.f32 %v552, %v607
    %v661 = vadd.f32 %v554, %v611
    %v662 = vadd.f32 %v556, %v615
    %v663 = vadd.f32 %v558, %v619
    %v664 = vadd.f32 %v560, %v623
    %v665 = vadd.f32 %v562, %v627
    %v666 = vadd.f32 %v564, %v631
    %v667 = vadd.f32 %v566, %v635
    %684 = vset.pattern.permute.xlu0 0
    %685 = vperm.xlu0 %684, %v652
    %v686 = vpop.permute.xlu0 %685
    %687 = vset.pattern.permute.xlu0 0
    %688 = vperm.xlu0 %687, %v653
    %v689 = vpop.permute.xlu0 %688
    %690 = vset.pattern.permute.xlu0 0
    %691 = vperm.xlu0 %690, %v654
    %v692 = vpop.permute.xlu0 %691
    %693 = vset.pattern.permute.xlu0 0
    %694 = vperm.xlu0 %693, %v655
    %v695 = vpop.permute.xlu0 %694
    %696 = vset.pattern.permute.xlu0 0
    %697 = vperm.xlu0 %696, %v656
    %v698 = vpop.permute.xlu0 %697
    %699 = vset.pattern.permute.xlu0 0
    %700 = vperm.xlu0 %699, %v657
    %v701 = vpop.permute.xlu0 %700
    %702 = vset.pattern.permute.xlu0 0
    %703 = vperm.xlu0 %702, %v658
    %v704 = vpop.permute.xlu0 %703
    %705 = vset.pattern.permute.xlu0 0
    %706 = vperm.xlu0 %705, %v659
    %v707 = vpop.permute.xlu0 %706
    %708 = vset.pattern.permute.xlu0 0
    %709 = vperm.xlu0 %708, %v660
    %v710 = vpop.permute.xlu0 %709
    %711 = vset.pattern.permute.xlu0 0
    %712 = vperm.xlu0 %711, %v661
    %v713 = vpop.permute.xlu0 %712
    %714 = vset.pattern.permute.xlu0 0
    %715 = vperm.xlu0 %714, %v662
    %v716 = vpop.permute.xlu0 %715
    %717 = vset.pattern.permute.xlu0 0
    %718 = vperm.xlu0 %717, %v663
    %v719 = vpop.permute.xlu0 %718
    %720 = vset.pattern.permute.xlu0 0
    %721 = vperm.xlu0 %720, %v664
    %v722 = vpop.permute.xlu0 %721
    %723 = vset.pattern.permute.xlu0 0
    %724 = vperm.xlu0 %723, %v665
    %v725 = vpop.permute.xlu0 %724
    %726 = vset.pattern.permute.xlu0 0
    %727 = vperm.xlu0 %726, %v666
    %v728 = vpop.permute.xlu0 %727
    %729 = vset.pattern.permute.xlu0 0
    %730 = vperm.xlu0 %729, %v667
    %v731 = vpop.permute.xlu0 %730
    %v732 = vlaneseq
    %v733 = vand.u32 %v732, 127
    %v734 = vlaneseq
    %v735 = vshrl.u32 %v734, 7
    %v736 = vsub.s32 %v733, %v735
    %v737 = vrot.slane %v686, %v736
    %v738 = vadd.s32 %v733, 4294967288
    %v739 = vlaneseq
    %v740 = vshrl.u32 %v739, 7
    %v741 = vsub.s32 %v738, %v740
    %v742 = vrot.slane %v689, %v741
    %vm743 = vcmask 130112
    %v744 = vsel %vm743, %v742, %v737
    %v745 = vadd.s32 %v733, 4294967280
    %v746 = vlaneseq
    %v747 = vshrl.u32 %v746, 7
    %v748 = vsub.s32 %v745, %v747
    %v749 = vrot.slane %v692, %v748
    %vm750 = vcmask 195712
    %v751 = vsel %vm750, %v749, %v744
    %v752 = vadd.s32 %v733, 4294967272
    %v753 = vlaneseq
    %v754 = vshrl.u32 %v753, 7
    %v755 = vsub.s32 %v752, %v754
    %v756 = vrot.slane %v695, %v755
    %vm757 = vcmask 261312
    %v758 = vsel %vm757, %v756, %v751
    %v759 = vadd.s32 %v733, 4294967264
    %v760 = vlaneseq
    %v761 = vshrl.u32 %v760, 7
    %v762 = vsub.s32 %v759, %v761
    %v763 = vrot.slane %v698, %v762
    %vm764 = vcmask 326912
    %v765 = vsel %vm764, %v763, %v758
    %v766 = vadd.s32 %v733, 4294967256
    %v767 = vlaneseq
    %v768 = vshrl.u32 %v767, 7
    %v769 = vsub.s32 %v766, %v768
    %v770 = vrot.slane %v701, %v769
    %vm771 = vcmask 392512
    %v772 = vsel %vm771, %v770, %v765
    %v773 = vadd.s32 %v733, 4294967248
    %v774 = vlaneseq
    %v775 = vshrl.u32 %v774, 7
    %v776 = vsub.s32 %v773, %v775
    %v777 = vrot.slane %v704, %v776
    %vm778 = vcmask 458112
    %v779 = vsel %vm778, %v777, %v772
    %v780 = vadd.s32 %v733, 4294967240
    %v781 = vlaneseq
    %v782 = vshrl.u32 %v781, 7
    %v783 = vsub.s32 %v780, %v782
    %v784 = vrot.slane %v707, %v783
    %vm785 = vcmask 523712
    %v786 = vsel %vm785, %v784, %v779
    %v787 = vadd.s32 %v733, 4294967232
    %v788 = vlaneseq
    %v789 = vshrl.u32 %v788, 7
    %v790 = vsub.s32 %v787, %v789
    %v791 = vrot.slane %v710, %v790
    %vm792 = vcmask 589312
    %v793 = vsel %vm792, %v791, %v786
    %v794 = vadd.s32 %v733, 4294967224
    %v795 = vlaneseq
    %v796 = vshrl.u32 %v795, 7
    %v797 = vsub.s32 %v794, %v796
    %v798 = vrot.slane %v713, %v797
    %vm799 = vcmask 654912
    %v800 = vsel %vm799, %v798, %v793
    %v801 = vadd.s32 %v733, 4294967216
    %v802 = vlaneseq
    %v803 = vshrl.u32 %v802, 7
    %v804 = vsub.s32 %v801, %v803
    %v805 = vrot.slane %v716, %v804
    %vm806 = vcmask 720512
    %v807 = vsel %vm806, %v805, %v800
    %v808 = vadd.s32 %v733, 4294967208
    %v809 = vlaneseq
    %v810 = vshrl.u32 %v809, 7
    %v811 = vsub.s32 %v808, %v810
    %v812 = vrot.slane %v719, %v811
    %vm813 = vcmask 786112
    %v814 = vsel %vm813, %v812, %v807
    %v815 = vadd.s32 %v733, 4294967200
    %v816 = vlaneseq
    %v817 = vshrl.u32 %v816, 7
    %v818 = vsub.s32 %v815, %v817
    %v819 = vrot.slane %v722, %v818
    %vm820 = vcmask 851712
    %v821 = vsel %vm820, %v819, %v814
    %v822 = vadd.s32 %v733, 4294967192
    %v823 = vlaneseq
    %v824 = vshrl.u32 %v823, 7
    %v825 = vsub.s32 %v822, %v824
    %v826 = vrot.slane %v725, %v825
    %vm827 = vcmask 917312
    %v828 = vsel %vm827, %v826, %v821
    %v829 = vadd.s32 %v733, 4294967184
    %v830 = vlaneseq
    %v831 = vshrl.u32 %v830, 7
    %v832 = vsub.s32 %v829, %v831
    %v833 = vrot.slane %v728, %v832
    %vm834 = vcmask 982912
    %v835 = vsel %vm834, %v833, %v828
    %v836 = vadd.s32 %v733, 4294967176
    %v837 = vlaneseq
    %v838 = vshrl.u32 %v837, 7
    %v839 = vsub.s32 %v836, %v838
    %v840 = vrot.slane %v731, %v839
    %vm841 = vcmask 1048512
    %v842 = vsel %vm841, %v840, %v835
    %844 = vst [vmem:[#allocation2] sm:$0x1] %v842
    // Predicated region
    $region30: #{tpu_custom_call.1} parent=1 // pred_check
      _
    $region31: #{tpu_custom_call.1} parent=1 // pred_check_branch
      %846 = sbr.rel (0) target = $region33
    $region32: #{tpu_custom_call.1} parent=1 // pred_region
      %s848 = ssub.s32 16, 16
      %849 = vsyncadd [#allocation3], %s848
      %s851 = sshll.u32 [#allocation2], 4
      %s852 = int_to_ptr.vmem [resolvable:$true] %s851
      %854 = dma.vmem_to_hbm [thread:$0]  %s852, 16, %s7, [#allocation3]
    $region33: #{tpu_custom_call.1} parent=1 // pred_fallthru
      _
    // Predicated region
    $region34: #{tpu_custom_call.1} parent=1 // pred_check
      _
    $region35: #{tpu_custom_call.1} parent=1 // pred_check_branch
      %856 = sbr.rel (0) target = $region37
    $region36: #{tpu_custom_call.1} parent=1 // pred_region
      %857 = dma.done [#allocation3], 16
    $region37: #{tpu_custom_call.1} parent=1 // pred_fallthru
      _
    %858 = vsyncpa [#allocation3], 1

</llo_original>
